<compile_context>
chip_gen: v5e
topology: v5e:2x2
jax: 0.10.0
libtpu: 0.0.40
codegen_flags: <defaults>
</compile_context>

<pallas_src>
import functools

import jax
import jax.numpy as jnp
from jax.experimental import pallas as pl
from jax.experimental.pallas import tpu as pltpu


def _round_up(x, m):
    return ((x + m - 1) // m) * m


def _vmem_capacity_bytes():
    try:
        cap = int(pltpu.get_tpu_info().vmem_capacity_bytes)
        if cap > 0:
            return cap
    except Exception:
        pass
    return 64 << 20  # conservative default (v7x per-core VMEM)


def _spec(block_shape, index_map, *, bufs=None):
    """BlockSpec; bufs=1 disables double-buffering for constant-index blocks."""
    if bufs is not None:
        try:
            return pl.BlockSpec(block_shape, index_map,
                                pipeline_mode=pl.Buffered(bufs))
        except Exception:  # API without pipeline_mode -> plain (double-buffered)
            pass
    return pl.BlockSpec(block_shape, index_map)


def _fused_vmem_bytes(tm, tn, h):
    return (tm * h * 2                 # h rows (single-buffered)
            + 2 * h * tn * 2           # W_out tile (double-buffered)
            + 2 * tn * 4               # b_out tile
            + h * 2 + 8                # colsum + bsum
            + tm * 4                   # targets
            + 2 * tm * tn * 2          # bf16 logits out tile
            + 2 * tm * 2 * 4           # per-row stats out tile
            + 3 * tm * 4)              # scratch (m, s, target-logit)


def _hidden_vmem_bytes(tm, h):
    return (2 * tm * h * 2             # x tile (double-buffered)
            + h * h * 2                # W_h (single-buffered)
            + h * 4                    # b_h
            + 2 * tm * h * 2)          # h out tile (double-buffered)


def _pick_row_tile(n_rows, h_dim, tn, budget_bytes):
    n_min = max(_round_up(n_rows, 16), 16)     # multiple of 16 for bf16 packing
    for cand in (512, 256, 128, 64, 32, 16):
        if cand <= n_min and _fused_vmem_bytes(cand, tn, h_dim) <= budget_bytes:
            return cand
    return 16


# ----------------------------------------------------------------------------
# Kernel 1: hidden projection  h = tanh(x @ W_h + b_h)
# ----------------------------------------------------------------------------
def _hidden_kernel(x_ref, wh_ref, bh_ref, h_ref):
    h = jnp.dot(x_ref[...], wh_ref[...],
                preferred_element_type=jnp.float32) + bh_ref[...]
    h_ref[...] = jnp.tanh(h).astype(h_ref.dtype)


# ----------------------------------------------------------------------------
# Kernel 2: fused vocab projection -> bf16 logits + label-smoothed NLL stats
# ----------------------------------------------------------------------------
def _vocab_loss_kernel(h_ref, colsum_ref, wo_ref, bo_ref, tgt_ref, bsum_ref,
                       logits_ref, stats_ref,
                       m_scr, s_scr, tl_scr,
                       *, pad_id, true_vocab, tn):
    j = pl.program_id(1)

    @pl.when(j == 0)
    def _init():
        m_scr[...] = jnp.full_like(m_scr, -1e30)   # finite: no -inf NaN hazard
        s_scr[...] = jnp.zeros_like(s_scr)
        tl_scr[...] = jnp.zeros_like(tl_scr)

    # vocab-tile projection on the MXU (bf16 operands, f32 accumulation)
    z = jnp.dot(h_ref[...], wo_ref[...],
                preferred_element_type=jnp.float32) + bo_ref[...]     # [TM, TN]
    logits_ref[...] = z.astype(logits_ref.dtype)                     # bf16 out

    # mask padded vocab columns out of the softmax statistics
    col = jax.lax.broadcasted_iota(jnp.int32, z.shape, 1) + j * tn
    zm = jnp.where(col < true_vocab, z, -1e30)

    # online softmax statistics (no lprobs / one-hot temporaries)
    m_old = m_scr[...]
    m_new = jnp.maximum(m_old, jnp.max(zm, axis=-1, keepdims=True))
    s_scr[...] = (s_scr[...] * jnp.exp(m_old - m_new)
                  + jnp.sum(jnp.exp(zm - m_new), axis=-1, keepdims=True))
    m_scr[...] = m_new

    tgt = tgt_ref[...]                                                # [TM, 1]
    tl_scr[...] = tl_scr[...] + jnp.sum(
        jnp.where(col == tgt, z, 0.0), axis=-1, keepdims=True)

    @pl.when(j == pl.num_programs(1) - 1)
    def _finalize():
        lse = m_scr[...] + jnp.log(s_scr[...])                        # [TM, 1]
        # closed form: sum_c z_c = h . colsum(W_out) + sum(b_out)
        sum_z = jnp.dot(h_ref[...], colsum_ref[...],
                        preferred_element_type=jnp.float32) + bsum_ref[...]
        keep = (tgt != pad_id).astype(jnp.float32)   # also kills padded rows
        nll = (lse - tl_scr[...]) * keep                    # lse - logit[t]
        smooth = (true_vocab * lse - sum_z) * keep          # V*lse - sum(z)
        stats_ref[...] = jnp.concatenate([nll, smooth], axis=-1)


def head_and_loss(x, w_h, b_h, w_out, b_out, target, *, pad_id):
    """x:[N,H] f32 -> (logits [N,V] bf16, per-row stats [N_pad,2]=(nll,smooth))."""
    n, h_dim = x.shape
    v = w_out.shape[1]

    # --- vocab tiling: pad V to a tile multiple (never a full-vocab block) ---
    tn = 512 if v >= 512 else _round_up(v, 128)
    v_pad = _round_up(v, tn)

    phys = _vmem_capacity_bytes()
    budget = int(phys * 0.6)            # leave headroom for compiler internals
    vmem_limit = int(phys * 0.75)

    tm = _pick_row_tile(n, h_dim, tn, budget)
    n_pad = _round_up(n, tm)

    # --- padding / dtype prep (bf16 operands into the MXU) -------------------
    x_p = jnp.pad(x, ((0, n_pad - n), (0, 0))).astype(jnp.bfloat16)
    tgt_p = jnp.pad(target.reshape(-1).astype(jnp.int32), (0, n_pad - n),
                    constant_values=pad_id).reshape(n_pad, 1)
    w_h_b = w_h.astype(jnp.bfloat16)
    b_h_f = b_h.reshape(1, h_dim).astype(jnp.float32)
    w_out_p = jnp.pad(w_out, ((0, 0), (0, v_pad - v))).astype(jnp.bfloat16)
    b_out_p = jnp.pad(b_out.reshape(1, v),
                      ((0, 0), (0, v_pad - v))).astype(jnp.float32)
    colsum = jnp.sum(w_out, axis=1).reshape(h_dim, 1).astype(jnp.bfloat16)
    bsum = jnp.sum(b_out).reshape(1, 1).astype(jnp.float32)

    # --- kernel 1: hidden projection -----------------------------------------
    tm_h = tm
    while tm_h > 16 and _hidden_vmem_bytes(tm_h, h_dim) > budget:
        tm_h //= 2
    hidden_cost = pl.CostEstimate(
        flops=2 * n_pad * h_dim * h_dim,
        transcendentals=n_pad * h_dim,
        bytes_accessed=2 * n_pad * h_dim * 2 + h_dim * h_dim * 2 + h_dim * 4)
    h_pad = pl.pallas_call(
        _hidden_kernel,
        out_shape=jax.ShapeDtypeStruct((n_pad, h_dim), jnp.bfloat16),
        grid_spec=pltpu.PrefetchScalarGridSpec(
            num_scalar_prefetch=0,
            grid=(n_pad // tm_h,),
            in_specs=[
                _spec((tm_h, h_dim), lambda i: (i, 0)),
                _spec((h_dim, h_dim), lambda i: (0, 0), bufs=1),   # W_h once
                _spec((1, h_dim), lambda i: (0, 0), bufs=1),       # b_h once
            ],
            out_specs=_spec((tm_h, h_dim), lambda i: (i, 0)),
        ),
        compiler_params=pltpu.CompilerParams(
            dimension_semantics=("parallel",),
            vmem_limit_bytes=vmem_limit),
        cost_estimate=hidden_cost,
    )(x_p, w_h_b, b_h_f)

    # --- kernel 2: fused vocab projection + loss statistics ------------------
    grid = (n_pad // tm, v_pad // tn)
    fused_cost = pl.CostEstimate(
        flops=2 * n_pad * v_pad * h_dim + 2 * n_pad * h_dim,
        transcendentals=n_pad * v_pad,
        bytes_accessed=(grid[0] * h_dim * v_pad * 2      # W_out streamed / row tile
                        + n_pad * h_dim * 2              # h read
                        + n_pad * v_pad * 2              # bf16 logits writeback
                        + n_pad * 2 * 4))
    kernel = functools.partial(_vocab_loss_kernel, pad_id=pad_id,
                               true_vocab=v, tn=tn)
    # TODO(synk): a loss-only variant that drops the logits output entirely
    # would remove the dominant HBM stream when the caller ignores logits.
    logits_p, stats = pl.pallas_call(
        kernel,
        out_shape=(
            jax.ShapeDtypeStruct((n_pad, v_pad), jnp.bfloat16),
            jax.ShapeDtypeStruct((n_pad, 2), jnp.float32),
        ),
        grid_spec=pltpu.PrefetchScalarGridSpec(
            num_scalar_prefetch=0,
            grid=grid,
            in_specs=[
                _spec((tm, h_dim), lambda i, j: (i, 0), bufs=1),   # h rows
                _spec((h_dim, 1), lambda i, j: (0, 0), bufs=1),    # colsum(W_out)
                _spec((h_dim, tn), lambda i, j: (0, j)),           # W_out tile
                _spec((1, tn), lambda i, j: (0, j)),               # b_out tile
                _spec((tm, 1), lambda i, j: (i, 0), bufs=1),       # targets
                _spec((1, 1), lambda i, j: (0, 0), bufs=1),        # sum(b_out)
            ],
            out_specs=(
                _spec((tm, tn), lambda i, j: (i, j)),              # logits tile
                _spec((tm, 2), lambda i, j: (i, 0)),               # (nll, smooth)
            ),
            scratch_shapes=[
                pltpu.VMEM((tm, 1), jnp.float32),   # running max
                pltpu.VMEM((tm, 1), jnp.float32),   # running sum(exp)
                pltpu.VMEM((tm, 1), jnp.float32),   # gathered target logit
            ],
        ),
        compiler_params=pltpu.CompilerParams(
            dimension_semantics=("parallel", "arbitrary"),
            vmem_limit_bytes=vmem_limit),
        cost_estimate=fused_cost,
    )(h_pad, colsum, w_out_p, b_out_p, tgt_p, bsum)

    return logits_p[:n, :v], stats


# ----------------------------------------------------------------------------
# Editor.forward (functional)
# ----------------------------------------------------------------------------
def editor_forward(params, input_ids, attention_mask, decoder_input_ids,
                   decoder_attention_mask, *, eps, pad_id):
    target = decoder_input_ids[:, 1:]                 # [B, T]
    dec_in = decoder_input_ids[:, :-1]                # [B, T]
    B, T = dec_in.shape
    V = params["w_out"].shape[1]

    # glue (XLA): embedding gathers + masked mean-pool encoder context
    enc_emb = params["emb_enc"][input_ids]            # [B, Tenc, H]
    am = attention_mask.astype(jnp.float32)
    enc_ctx = (enc_emb * am[..., None]).sum(axis=1) / jnp.maximum(
        am.sum(axis=1, keepdims=True), 1.0)           # [B, H]
    dec_emb = params["emb_dec"][dec_in]               # [B, T, H]
    x = (dec_emb + enc_ctx[:, None, :]).reshape(B * T, -1).astype(jnp.float32)

    logits_flat, stats = head_and_loss(
        x, params["w_h"], params["b_h"], params["w_out"], params["b_out"],
        target, pad_id=pad_id)
    logits = logits_flat.reshape(B, T, V)             # bf16

    nll_sum = jnp.sum(stats[:, 0])
    smooth_sum = jnp.sum(stats[:, 1])
    # TODO(synk): some fairseq variants use eps/(V-1); UniKE's
    # label_smoothed_nll_loss uses eps/V, which is what we match here.
    loss_sum = (1.0 - eps) * nll_sum + (eps / V) * smooth_sum
    ntokens = decoder_attention_mask[:, 1:].sum().astype(jnp.float32)
    loss = loss_sum / ntokens

    # TODO(synk): act_loss / memo_loss branches depend on runtime-inserted
    # ModifyLinearOutput editors; with activate_loss == memory_loss == 'non_use'
    # (the defaults) they are never computed, so they are omitted here.
    return {"logtis": logits, "loss": loss}


# ----------------------------------------------------------------------------
# Pure-JAX reference for validation
# ----------------------------------------------------------------------------
def editor_forward_ref(params, input_ids, attention_mask, decoder_input_ids,
                       decoder_attention_mask, *, eps, pad_id):
    target = decoder_input_ids[:, 1:]
    dec_in = decoder_input_ids[:, :-1]
    B, T = dec_in.shape
    V = params["w_out"].shape[1]

    enc_emb = params["emb_enc"][input_ids]
    am = attention_mask.astype(jnp.float32)
    enc_ctx = (enc_emb * am[..., None]).sum(axis=1) / jnp.maximum(
        am.sum(axis=1, keepdims=True), 1.0)
    dec_emb = params["emb_dec"][dec_in]
    x = (dec_emb + enc_ctx[:, None, :]).reshape(B * T, -1).astype(jnp.float32)

    h = jnp.tanh(x @ params["w_h"] + params["b_h"])
    logits_flat = h @ params["w_out"] + params["b_out"]
    logits = logits_flat.reshape(B, T, V)

    lprobs = jax.nn.log_softmax(logits_flat, axis=-1)
    tgt = target.reshape(B * T)
    nll = -jnp.take_along_axis(lprobs, tgt[:, None], axis=-1)[:, 0]
    smooth = -lprobs.sum(axis=-1)
    keep = (tgt != pad_id).astype(jnp.float32)
    nll_sum = (nll * keep).sum()
    smooth_sum = (smooth * keep).sum()
    loss_sum = (1.0 - eps) * nll_sum + (eps / V) * smooth_sum
    ntokens = decoder_attention_mask[:, 1:].sum().astype(jnp.float32)
    return {"logtis": logits, "loss": loss_sum / ntokens}


if __name__ == "__main__":
    # small, forward-consistent shapes
    B, T_ENC, T_DEC, H, V = 2, 8, 8, 32, 128
    EPS = 0.1
    PAD_ID = 0

    key = jax.random.PRNGKey(0)
    k_ee, k_ed, k_wh, k_wo, k_in, k_dec = jax.random.split(key, 6)

    params = {
        "emb_enc": jax.random.normal(k_ee, (V, H), jnp.float32) * 0.02,
        "emb_dec": jax.random.normal(k_ed, (V, H), jnp.float32) * 0.02,
        "w_h": jax.random.normal(k_wh, (H, H), jnp.float32) * 0.1,
        "b_h": jnp.zeros((1, H), jnp.float32),
        "w_out": jax.random.normal(k_wo, (H, V), jnp.float32) * 0.1,
        "b_out": jnp.zeros((1, V), jnp.float32),
    }

    input_ids = jax.random.randint(k_in, (B, T_ENC), 1, V, dtype=jnp.int32)
    attention_mask = jnp.ones((B, T_ENC), jnp.int32)

    decoder_input_ids = jax.random.randint(k_dec, (B, T_DEC), 1, V, dtype=jnp.int32)
    decoder_attention_mask = jnp.ones((B, T_DEC), jnp.int32)
    # pad the tail of the second sequence to exercise ignore_index masking
    decoder_input_ids = decoder_input_ids.at[1, -2:].set(PAD_ID)
    decoder_attention_mask = decoder_attention_mask.at[1, -2:].set(0)

    fwd = jax.jit(functools.partial(editor_forward, eps=EPS, pad_id=PAD_ID))
    out = fwd(params, input_ids, attention_mask,
              decoder_input_ids, decoder_attention_mask)
    jax.block_until_ready(out)

    ref = editor_forward_ref(params, input_ids, attention_mask,
                             decoder_input_ids, decoder_attention_mask,
                             eps=EPS, pad_id=PAD_ID)

    assert out["logtis"].shape == (B, T_DEC - 1, V)
    # kernel uses bf16 MXU operands / bf16 logits output -> loosened tolerance
    assert jnp.allclose(out["logtis"].astype(jnp.float32), ref["logtis"],
                        atol=1e-2, rtol=1e-2)
    assert jnp.allclose(out["loss"], ref["loss"], atol=1e-2, rtol=1e-2)

    print("KERNEL_OK")
</pallas_src>

<mosaic_0001>
module attributes {stable_mosaic.version = 11 : i64} {
  func.func @_hidden_kernel(%arg0: i32, %arg1: memref<16x32xbf16, #tpu.memory_space<vmem>>, %arg2: memref<32x32xbf16, #tpu.memory_space<vmem>>, %arg3: memref<1x32xf32, #tpu.memory_space<vmem>>, %arg4: memref<16x32xbf16, #tpu.memory_space<vmem>>) attributes {dimension_semantics = [#tpu.dimension_semantics<parallel>], iteration_bounds = array<i64: 1>, scalar_prefetch = 0 : i64, scratch_operands = 0 : i64, tpu.core_type = #tpu.core_type<tc>, window_params = [{transform_indices = @transform_0, window_bounds = array<i64: 16, 32>}, {pipeline_mode = #tpu.pipeline_mode<synchronous>, transform_indices = @transform_1, window_bounds = array<i64: 32, 32>}, {pipeline_mode = #tpu.pipeline_mode<synchronous>, transform_indices = @transform_2, window_bounds = array<i64: 1, 32>}, {transform_indices = @transform_3, window_bounds = array<i64: 16, 32>}]} {
    %c0 = arith.constant 0 : index
    %c0_0 = arith.constant 0 : index
    %0 = vector.load %arg1[%c0, %c0_0] : memref<16x32xbf16, #tpu.memory_space<vmem>>, vector<16x32xbf16>
    %c0_1 = arith.constant 0 : index
    %c0_2 = arith.constant 0 : index
    %1 = vector.load %arg2[%c0_1, %c0_2] : memref<32x32xbf16, #tpu.memory_space<vmem>>, vector<32x32xbf16>
    %cst = arith.constant dense<0.000000e+00> : vector<16x32xf32>
    %2 = tpu.matmul %0, %1, %cst {dimension_numbers = #tpu.dot_dimension_numbers<[1], [0], [0], [1], [0, 0, 1, 1], [], []>} : vector<16x32xbf16>, vector<32x32xbf16>, vector<16x32xf32> -> vector<16x32xf32>
    %c0_3 = arith.constant 0 : index
    %c0_4 = arith.constant 0 : index
    %3 = vector.load %arg3[%c0_3, %c0_4] : memref<1x32xf32, #tpu.memory_space<vmem>>, vector<1x32xf32>
    %4 = vector.broadcast %3 : vector<1x32xf32> to vector<16x32xf32>
    %5 = arith.addf %2, %4 : vector<16x32xf32>
    %6 = math.tanh %5 : vector<16x32xf32>
    %7 = arith.truncf %6 : vector<16x32xf32> to vector<16x32xbf16>
    %c0_5 = arith.constant 0 : index
    %c0_6 = arith.constant 0 : index
    %8 = vector.load %arg4[%c0_5, %c0_6] : memref<16x32xbf16, #tpu.memory_space<vmem>>, vector<16x32xbf16>
    tpu.vector_store %arg4[%c0_5, %c0_6], %7 {strides = array<i32>} : memref<16x32xbf16, #tpu.memory_space<vmem>>, vector<16x32xbf16>,
    return
  }
  func.func @transform_0(%arg0: i32) -> (i32, i32) {
    %c0_i32 = arith.constant 0 : i32
    %c0_i32_0 = arith.constant 0 : i32
    return %arg0, %c0_i32 : i32, i32
  }
  func.func @transform_1(%arg0: i32) -> (i32, i32) {
    %c0_i32 = arith.constant 0 : i32
    %c0_i32_0 = arith.constant 0 : i32
    %c0_i32_1 = arith.constant 0 : i32
    return %c0_i32, %c0_i32_0 : i32, i32
  }
  func.func @transform_2(%arg0: i32) -> (i32, i32) {
    %c0_i32 = arith.constant 0 : i32
    %c0_i32_0 = arith.constant 0 : i32
    %c0_i32_1 = arith.constant 0 : i32
    return %c0_i32, %c0_i32_0 : i32, i32
  }
  func.func @transform_3(%arg0: i32) -> (i32, i32) {
    %c0_i32 = arith.constant 0 : i32
    %c0_i32_0 = arith.constant 0 : i32
    return %arg0, %c0_i32 : i32, i32
  }
}

module attributes {stable_mosaic.version = 11 : i64} {
  func.func @_vocab_loss_kernel(%arg0: i32, %arg1: i32, %arg2: memref<16x32xbf16, #tpu.memory_space<vmem>>, %arg3: memref<32x1xbf16, #tpu.memory_space<vmem>>, %arg4: memref<32x128xbf16, #tpu.memory_space<vmem>>, %arg5: memref<1x128xf32, #tpu.memory_space<vmem>>, %arg6: memref<16x1xi32, #tpu.memory_space<vmem>>, %arg7: memref<1x1xf32, #tpu.memory_space<vmem>>, %arg8: memref<16x128xbf16, #tpu.memory_space<vmem>>, %arg9: memref<16x2xf32, #tpu.memory_space<vmem>>, %arg10: memref<16x1xf32, #tpu.memory_space<vmem>>, %arg11: memref<16x1xf32, #tpu.memory_space<vmem>>, %arg12: memref<16x1xf32, #tpu.memory_space<vmem>>) attributes {dimension_semantics = [#tpu.dimension_semantics<parallel>, #tpu.dimension_semantics<arbitrary>], iteration_bounds = array<i64: 1, 1>, scalar_prefetch = 0 : i64, scratch_operands = 3 : i64, tpu.core_type = #tpu.core_type<tc>, window_params = [{pipeline_mode = #tpu.pipeline_mode<synchronous>, transform_indices = @transform_0, window_bounds = array<i64: 16, 32>}, {pipeline_mode = #tpu.pipeline_mode<synchronous>, transform_indices = @transform_1, window_bounds = array<i64: 32, 1>}, {transform_indices = @transform_2, window_bounds = array<i64: 32, 128>}, {transform_indices = @transform_3, window_bounds = array<i64: 1, 128>}, {pipeline_mode = #tpu.pipeline_mode<synchronous>, transform_indices = @transform_4, window_bounds = array<i64: 16, 1>}, {pipeline_mode = #tpu.pipeline_mode<synchronous>, transform_indices = @transform_5, window_bounds = array<i64: 1, 1>}, {transform_indices = @transform_6, window_bounds = array<i64: 16, 128>}, {transform_indices = @transform_7, window_bounds = array<i64: 16, 2>}]} {
    %c0_i32 = arith.constant 0 : i32
    %0 = arith.cmpi eq, %arg1, %c0_i32 : i32
    %1 = arith.extui %0 : i1 to i32
    %c0_i32_0 = arith.constant 0 : i32
    %2 = arith.cmpi ne, %1, %c0_i32_0 : i32
    scf.if %2 {
      %cst_30 = arith.constant -1.000000e+30 : f32
      %48 = vector.broadcast %cst_30 : f32 to vector<16x1xf32>
      %c0_31 = arith.constant 0 : index
      %c0_32 = arith.constant 0 : index
      %49 = vector.load %arg10[%c0_31, %c0_32] : memref<16x1xf32, #tpu.memory_space<vmem>>, vector<16x1xf32>
      tpu.vector_store %arg10[%c0_31, %c0_32], %48 {strides = array<i32>} : memref<16x1xf32, #tpu.memory_space<vmem>>, vector<16x1xf32>,
      %cst_33 = arith.constant 0.000000e+00 : f32
      %50 = vector.broadcast %cst_33 : f32 to vector<16x1xf32>
      %c0_34 = arith.constant 0 : index
      %c0_35 = arith.constant 0 : index
      %51 = vector.load %arg11[%c0_34, %c0_35] : memref<16x1xf32, #tpu.memory_space<vmem>>, vector<16x1xf32>
      tpu.vector_store %arg11[%c0_34, %c0_35], %50 {strides = array<i32>} : memref<16x1xf32, #tpu.memory_space<vmem>>, vector<16x1xf32>,
      %cst_36 = arith.constant 0.000000e+00 : f32
      %52 = vector.broadcast %cst_36 : f32 to vector<16x1xf32>
      %c0_37 = arith.constant 0 : index
      %c0_38 = arith.constant 0 : index
      %53 = vector.load %arg12[%c0_37, %c0_38] : memref<16x1xf32, #tpu.memory_space<vmem>>, vector<16x1xf32>
      tpu.vector_store %arg12[%c0_37, %c0_38], %52 {strides = array<i32>} : memref<16x1xf32, #tpu.memory_space<vmem>>, vector<16x1xf32>,
    } else {
    }
    %c0 = arith.constant 0 : index
    %c0_1 = arith.constant 0 : index
    %3 = vector.load %arg2[%c0, %c0_1] : memref<16x32xbf16, #tpu.memory_space<vmem>>, vector<16x32xbf16>
    %c0_2 = arith.constant 0 : index
    %c0_3 = arith.constant 0 : index
    %4 = vector.load %arg4[%c0_2, %c0_3] : memref<32x128xbf16, #tpu.memory_space<vmem>>, vector<32x128xbf16>
    %cst = arith.constant dense<0.000000e+00> : vector<16x128xf32>
    %5 = tpu.matmul %3, %4, %cst {dimension_numbers = #tpu.dot_dimension_numbers<[1], [0], [0], [1], [0, 0, 1, 1], [], []>} : vector<16x32xbf16>, vector<32x128xbf16>, vector<16x128xf32> -> vector<16x128xf32>
    %c0_4 = arith.constant 0 : index
    %c0_5 = arith.constant 0 : index
    %6 = vector.load %arg5[%c0_4, %c0_5] : memref<1x128xf32, #tpu.memory_space<vmem>>, vector<1x128xf32>
    %7 = vector.broadcast %6 : vector<1x128xf32> to vector<16x128xf32>
    %8 = arith.addf %5, %7 : vector<16x128xf32>
    %9 = arith.truncf %8 : vector<16x128xf32> to vector<16x128xbf16>
    %c0_6 = arith.constant 0 : index
    %c0_7 = arith.constant 0 : index
    %10 = vector.load %arg8[%c0_6, %c0_7] : memref<16x128xbf16, #tpu.memory_space<vmem>>, vector<16x128xbf16>
    tpu.vector_store %arg8[%c0_6, %c0_7], %9 {strides = array<i32>} : memref<16x128xbf16, #tpu.memory_space<vmem>>, vector<16x128xbf16>,
    %11 = tpu.iota {dimensions = array<i32: 1>} : vector<16x128xi32>
    %c128_i32 = arith.constant 128 : i32
    %12 = arith.muli %arg1, %c128_i32 : i32
    %13 = vector.broadcast %12 : i32 to vector<16x128xi32>
    %14 = arith.addi %11, %13 : vector<16x128xi32>
    %c128_i32_8 = arith.constant 128 : i32
    %15 = vector.broadcast %c128_i32_8 : i32 to vector<16x128xi32>
    %16 = arith.cmpi slt, %14, %15 : vector<16x128xi32>
    %cst_9 = arith.constant -1.000000e+30 : f32
    %17 = vector.broadcast %cst_9 : f32 to vector<16x128xf32>
    %18 = arith.select %16, %8, %17 : vector<16x128xi1>, vector<16x128xf32>
    %c0_10 = arith.constant 0 : index
    %c0_11 = arith.constant 0 : index
    %19 = vector.load %arg10[%c0_10, %c0_11] : memref<16x1xf32, #tpu.memory_space<vmem>>, vector<16x1xf32>
    %cst_12 = arith.constant dense<0xFF800000> : vector<16xf32>
    %20 = vector.multi_reduction <maximumf>, %18, %cst_12 [1] : vector<16x128xf32> to vector<16xf32>
    %21 = vector.shape_cast %20 : vector<16xf32> to vector<16x1xf32>
    %22 = arith.maximumf %19, %21 : vector<16x1xf32>
    %c0_13 = arith.constant 0 : index
    %c0_14 = arith.constant 0 : index
    %23 = vector.load %arg11[%c0_13, %c0_14] : memref<16x1xf32, #tpu.memory_space<vmem>>, vector<16x1xf32>
    %24 = arith.subf %19, %22 : vector<16x1xf32>
    %25 = math.exp %24 : vector<16x1xf32>
    %26 = arith.mulf %23, %25 : vector<16x1xf32>
    %27 = vector.broadcast %22 : vector<16x1xf32> to vector<16x128xf32>
    %28 = arith.subf %18, %27 : vector<16x128xf32>
    %29 = math.exp %28 : vector<16x128xf32>
    %cst_15 = arith.constant dense<0.000000e+00> : vector<16xf32>
    %30 = vector.multi_reduction <add>, %29, %cst_15 [1] : vector<16x128xf32> to vector<16xf32>
    %31 = vector.shape_cast %30 : vector<16xf32> to vector<16x1xf32>
    %32 = arith.addf %26, %31 : vector<16x1xf32>
    %c0_16 = arith.constant 0 : index
    %c0_17 = arith.constant 0 : index
    %33 = vector.load %arg11[%c0_16, %c0_17] : memref<16x1xf32, #tpu.memory_space<vmem>>, vector<16x1xf32>
    tpu.vector_store %arg11[%c0_16, %c0_17], %32 {strides = array<i32>} : memref<16x1xf32, #tpu.memory_space<vmem>>, vector<16x1xf32>,
    %c0_18 = arith.constant 0 : index
    %c0_19 = arith.constant 0 : index
    %34 = vector.load %arg10[%c0_18, %c0_19] : memref<16x1xf32, #tpu.memory_space<vmem>>, vector<16x1xf32>
    tpu.vector_store %arg10[%c0_18, %c0_19], %22 {strides = array<i32>} : memref<16x1xf32, #tpu.memory_space<vmem>>, vector<16x1xf32>,
    %c0_20 = arith.constant 0 : index
    %c0_21 = arith.constant 0 : index
    %35 = vector.load %arg6[%c0_20, %c0_21] : memref<16x1xi32, #tpu.memory_space<vmem>>, vector<16x1xi32>
    %c0_22 = arith.constant 0 : index
    %c0_23 = arith.constant 0 : index
    %36 = vector.load %arg12[%c0_22, %c0_23] : memref<16x1xf32, #tpu.memory_space<vmem>>, vector<16x1xf32>
    %37 = vector.broadcast %35 : vector<16x1xi32> to vector<16x128xi32>
    %38 = arith.cmpi eq, %14, %37 : vector<16x128xi32>
    %cst_24 = arith.constant 0.000000e+00 : f32
    %39 = vector.broadcast %cst_24 : f32 to vector<16x128xf32>
    %40 = arith.select %38, %8, %39 : vector<16x128xi1>, vector<16x128xf32>
    %cst_25 = arith.constant dense<0.000000e+00> : vector<16xf32>
    %41 = vector.multi_reduction <add>, %40, %cst_25 [1] : vector<16x128xf32> to vector<16xf32>
    %42 = vector.shape_cast %41 : vector<16xf32> to vector<16x1xf32>
    %43 = arith.addf %36, %42 : vector<16x1xf32>
    %c0_26 = arith.constant 0 : index
    %c0_27 = arith.constant 0 : index
    %44 = vector.load %arg12[%c0_26, %c0_27] : memref<16x1xf32, #tpu.memory_space<vmem>>, vector<16x1xf32>
    tpu.vector_store %arg12[%c0_26, %c0_27], %43 {strides = array<i32>} : memref<16x1xf32, #tpu.memory_space<vmem>>, vector<16x1xf32>,
    %c0_i32_28 = arith.constant 0 : i32
    %45 = arith.cmpi eq, %arg1, %c0_i32_28 : i32
    %46 = arith.extui %45 : i1 to i32
    %c0_i32_29 = arith.constant 0 : i32
    %47 = arith.cmpi ne, %46, %c0_i32_29 : i32
    scf.if %47 {
      %c0_30 = arith.constant 0 : index
      %c0_31 = arith.constant 0 : index
      %48 = vector.load %arg10[%c0_30, %c0_31] : memref<16x1xf32, #tpu.memory_space<vmem>>, vector<16x1xf32>
      %c0_32 = arith.constant 0 : index
      %c0_33 = arith.constant 0 : index
      %49 = vector.load %arg11[%c0_32, %c0_33] : memref<16x1xf32, #tpu.memory_space<vmem>>, vector<16x1xf32>
      %50 = math.log %49 : vector<16x1xf32>
      %51 = arith.addf %48, %50 : vector<16x1xf32>
      %c0_34 = arith.constant 0 : index
      %c0_35 = arith.constant 0 : index
      %52 = vector.load %arg2[%c0_34, %c0_35] : memref<16x32xbf16, #tpu.memory_space<vmem>>, vector<16x32xbf16>
      %c0_36 = arith.constant 0 : index
      %c0_37 = arith.constant 0 : index
      %53 = vector.load %arg3[%c0_36, %c0_37] : memref<32x1xbf16, #tpu.memory_space<vmem>>, vector<32x1xbf16>
      %cst_38 = arith.constant dense<0.000000e+00> : vector<16x1xf32>
      %54 = tpu.matmul %52, %53, %cst_38 {dimension_numbers = #tpu.dot_dimension_numbers<[1], [0], [0], [1], [0, 0, 1, 1], [], []>} : vector<16x32xbf16>, vector<32x1xbf16>, vector<16x1xf32> -> vector<16x1xf32>
      %c0_39 = arith.constant 0 : index
      %c0_40 = arith.constant 0 : index
      %55 = vector.load %arg7[%c0_39, %c0_40] : memref<1x1xf32, #tpu.memory_space<vmem>>, vector<1x1xf32>
      %56 = vector.broadcast %55 : vector<1x1xf32> to vector<16x1xf32>
      %57 = arith.addf %54, %56 : vector<16x1xf32>
      %c0_i32_41 = arith.constant 0 : i32
      %58 = vector.broadcast %c0_i32_41 : i32 to vector<16x1xi32>
      %59 = arith.cmpi ne, %35, %58 : vector<16x1xi32>
      %60 = arith.extui %59 : vector<16x1xi1> to vector<16x1xi32>
      %61 = arith.sitofp %60 : vector<16x1xi32> to vector<16x1xf32>
      %c0_42 = arith.constant 0 : index
      %c0_43 = arith.constant 0 : index
      %62 = vector.load %arg12[%c0_42, %c0_43] : memref<16x1xf32, #tpu.memory_space<vmem>>, vector<16x1xf32>
      %63 = arith.subf %51, %62 : vector<16x1xf32>
      %64 = arith.mulf %63, %61 : vector<16x1xf32>
      %cst_44 = arith.constant 1.280000e+02 : f32
      %65 = vector.broadcast %cst_44 : f32 to vector<16x1xf32>
      %66 = arith.mulf %65, %51 : vector<16x1xf32>
      %67 = arith.subf %66, %57 : vector<16x1xf32>
      %68 = arith.mulf %67, %61 : vector<16x1xf32>
      %69 = tpu.concatenate %64, %68 in 1 : vector<16x1xf32>, vector<16x1xf32> -> vector<16x2xf32>
      %c0_45 = arith.constant 0 : index
      %c0_46 = arith.constant 0 : index
      %70 = vector.load %arg9[%c0_45, %c0_46] : memref<16x2xf32, #tpu.memory_space<vmem>>, vector<16x2xf32>
      tpu.vector_store %arg9[%c0_45, %c0_46], %69 {strides = array<i32>} : memref<16x2xf32, #tpu.memory_space<vmem>>, vector<16x2xf32>,
    } else {
    }
    return
  }
  func.func @transform_0(%arg0: i32, %arg1: i32) -> (i32, i32) {
    %c0_i32 = arith.constant 0 : i32
    %c0_i32_0 = arith.constant 0 : i32
    return %arg0, %c0_i32 : i32, i32
  }
  func.func @transform_1(%arg0: i32, %arg1: i32) -> (i32, i32) {
    %c0_i32 = arith.constant 0 : i32
    %c0_i32_0 = arith.constant 0 : i32
    %c0_i32_1 = arith.constant 0 : i32
    return %c0_i32, %c0_i32_0 : i32, i32
  }
  func.func @transform_2(%arg0: i32, %arg1: i32) -> (i32, i32) {
    %c0_i32 = arith.constant 0 : i32
    %c0_i32_0 = arith.constant 0 : i32
    return %c0_i32, %arg1 : i32, i32
  }
  func.func @transform_3(%arg0: i32, %arg1: i32) -> (i32, i32) {
    %c0_i32 = arith.constant 0 : i32
    %c0_i32_0 = arith.constant 0 : i32
    return %c0_i32, %arg1 : i32, i32
  }
  func.func @transform_4(%arg0: i32, %arg1: i32) -> (i32, i32) {
    %c0_i32 = arith.constant 0 : i32
    %c0_i32_0 = arith.constant 0 : i32
    return %arg0, %c0_i32 : i32, i32
  }
  func.func @transform_5(%arg0: i32, %arg1: i32) -> (i32, i32) {
    %c0_i32 = arith.constant 0 : i32
    %c0_i32_0 = arith.constant 0 : i32
    %c0_i32_1 = arith.constant 0 : i32
    return %c0_i32, %c0_i32_0 : i32, i32
  }
  func.func @transform_6(%arg0: i32, %arg1: i32) -> (i32, i32) {
    %c0_i32 = arith.constant 0 : i32
    return %arg0, %arg1 : i32, i32
  }
  func.func @transform_7(%arg0: i32, %arg1: i32) -> (i32, i32) {
    %c0_i32 = arith.constant 0 : i32
    %c0_i32_0 = arith.constant 0 : i32
    return %arg0, %c0_i32 : i32, i32
  }
}

</mosaic_0001>

<llo_original>
// kernel: editor_forward.2
$region0: #{editor_forward.2}
  #allocation0 [shape = 'u32[]', space=smem, size = 0x4, offset = 0x4, fixed_abs, tag = 'smem constant byte address 0x4 - core index']
  #allocation1 [shape = 'u32[72,128]{1,0:T(1,128)}', space=vmem, size = 0x9000, scoped, tag = 'internal scratch']
  %s0 = inlined_call_operand.vmem [shape: bf16[16,32], index: 0, kind: input, shape index: {}]
  %s1 = inlined_call_operand.vmem [shape: bf16[32,32], index: 1, kind: input, shape index: {}]
  %s2 = inlined_call_operand.vmem [shape: f32[1,32], index: 2, kind: input, shape index: {}]
  %s3 = inlined_call_operand.vmem [shape: bf16[16,32], index: 3, kind: output, shape index: {}]
  %s4 = sld [smem:[#allocation0]]
  $region22: #{editor_forward.2} parent=0
    _
  %s6 = ssub.s32 1, %s4
  %s7 = scalar_select 0, %s6, %s4
  // Predicated region
  $region2: #{editor_forward.2} parent=0 // pred_check
    _
  $region3: #{editor_forward.2} parent=0 // pred_check_branch
    %9 = sbr.rel (0) target = $region5
  $region4: #{editor_forward.2} parent=0 // pred_region
    _
  $region5: #{editor_forward.2} parent=0 // pred_fallthru
    _
  // Predicated region
  $region6: #{editor_forward.2} parent=0 // pred_check
    _
  $region7: #{editor_forward.2} parent=0 // pred_check_branch
    %11 = sbr.rel (0) target = $region9
  $region8: #{editor_forward.2} parent=0 // pred_region
    _
  $region9: #{editor_forward.2} parent=0 // pred_fallthru
    _
  // Predicated region
  $region10: #{editor_forward.2} parent=0 // pred_check
    _
  $region11: #{editor_forward.2} parent=0 // pred_check_branch
    %13 = sbr.rel (0) target = $region13
  $region12: #{editor_forward.2} parent=0 // pred_region
    _
  $region13: #{editor_forward.2} parent=0 // pred_fallthru
    _
  %v15 = vld [vmem:[%s0] sm:$0xf]
  %v16 = vld [vmem:[%s0 + $0x4] sm:$0xf]
  %v17 = vld [vmem:[%s1] sm:$0xf]
  %v18 = vld [vmem:[%s1 + $0x4] sm:$0xf]
  %v19 = vld [vmem:[%s1 + $0x8] sm:$0xf]
  %v20 = vld [vmem:[%s1 + $0xc] sm:$0xf]
  %v21 = vld [vmem:[%s2] sm:$0x1]
  %v23 = vperm.slane %v21, 0
  %v27 = vunpack.c.l.b16 %v15
  %v28 = vunpack.c.l.b16 %v16
  %v29 = vpack.c.b16 %v28, %v27
  %v34 = vunpack.c.l.b16 %v17
  %v35 = vunpack.c.l.b16 %v18
  %v36 = vunpack.c.l.b16 %v19
  %v37 = vunpack.c.l.b16 %v20
  %v38 = vpack.c.b16 %v35, %v34
  %v39 = vpack.c.b16 %v37, %v36
  %vm42 = vcmask 261120
  %v44 = vsel %vm42, %v29, 0
  %46 = vmatpush.bf16.msra.mxu0 0
  %47 = vmatpush.bf16.msra.mxu0 0
  %48 = vmatpush.bf16.msra.mxu0 0
  %49 = vmatpush.bf16.msra.mxu0 0
  %50 = vmatpush.bf16.msra.mxu0 0
  %51 = vmatpush.bf16.msra.mxu0 0
  %52 = vmatpush.bf16.msra.mxu0 %v39
  %53 = vmatpush.bf16.msra.mxu0 %v38
  %54 = vmatmul.bf16.gmra.mxu0 %v44
  %v55 = vpop.f32.mrf.mxu0
  %v56 = vadd.f32 %v23, %v55
  %v57 = vpop.f32.mrf.mxu0
  %v58 = vadd.f32 %v23, %v57
  %59 = vdwg.mxu0
  %v60 = vtanh.pop %v56
  %v61 = vtanh.pop %v58
  %v62 = vpack.c.bf16 %v60, %v60
  %v63 = vpack.c.bf16 %v61, %v61
  %vm64 = vcmask 257024
  %65 = vst.msk [vmem:[%s3] sm:$0xf] %vm64, %v62
  %66 = vst.msk [vmem:[%s3 + $0x4] sm:$0xf] %vm64, %v63
  // Predicated region
  $region14: #{editor_forward.2} parent=0 // pred_check
    _
  $region15: #{editor_forward.2} parent=0 // pred_check_branch
    %68 = sbr.rel (0) target = $region17
  $region16: #{editor_forward.2} parent=0 // pred_region
    _
  $region17: #{editor_forward.2} parent=0 // pred_fallthru
    _
  // Predicated region
  $region18: #{editor_forward.2} parent=0 // pred_check
    _
  $region19: #{editor_forward.2} parent=0 // pred_check_branch
    %70 = sbr.rel (0) target = $region21
  $region20: #{editor_forward.2} parent=0 // pred_region
    _
  $region21: #{editor_forward.2} parent=0 // pred_fallthru
    _

// kernel: editor_forward.3
$region0: #{editor_forward.3}
  #allocation0 [shape = 'u32[]', space=smem, size = 0x4, offset = 0x4, fixed_abs, tag = 'smem constant byte address 0x4 - core index']
  #allocation1 [shape = 'u32[72,128]{1,0:T(1,128)}', space=vmem, size = 0x9000, scoped, tag = 'internal scratch']
  #allocation2 [shape = 'f32[16,1]{1,0:T(8,128)}', space=vmem, size = 0x2000, scoped, tag = 'scratch operand']
  #allocation3 [shape = 'f32[16,1]{1,0:T(8,128)}', space=vmem, size = 0x2000, scoped, tag = 'scratch operand']
  #allocation4 [shape = 'f32[16,1]{1,0:T(8,128)}', space=vmem, size = 0x2000, scoped, tag = 'scratch operand']
  #allocation5 [shape = 'f32[1,1]{1,0:T(1,128)S(1)}', space=vmem, size = 0x200, scoped, tag = 'scoped memory for editor_forward.3']
  %s0 = inlined_call_operand.vmem [shape: bf16[16,32], index: 0, kind: input, shape index: {}]
  %s1 = inlined_call_operand.vmem [shape: bf16[32,1], index: 1, kind: input, shape index: {}]
  %s2 = inlined_call_operand.vmem [shape: bf16[32,128], index: 2, kind: input, shape index: {}]
  %s3 = inlined_call_operand.vmem [shape: f32[1,128], index: 3, kind: input, shape index: {}]
  %s4 = inlined_call_operand.vmem [shape: s32[16,1], index: 4, kind: input, shape index: {}]
  %s5 = inlined_call_operand.<no memory space> [shape: f32[1,1], index: 5, kind: input, shape index: {}]
  %s6 = inlined_call_operand.vmem [shape: bf16[16,128], index: 6, kind: output, shape index: {0}]
  %s7 = inlined_call_operand.vmem [shape: f32[16,2], index: 7, kind: output, shape index: {1}]
  %8 = xla_tuple %s6, %s7
  %s9 = sld [smem:[#allocation0]]
  $region50: #{editor_forward.3} parent=0
    _
  %s11 = ssub.s32 1, %s9
  %s12 = scalar_select 0, %s11, %s9
  %v13 = vstv %s5
  %14 = vst [vmem:[#allocation5] sm:$0x1] %v13
  // Predicated region
  $region2: #{editor_forward.3} parent=0 // pred_check
    _
  $region3: #{editor_forward.3} parent=0 // pred_check_branch
    %16 = sbr.rel (0) target = $region5
  $region4: #{editor_forward.3} parent=0 // pred_region
    _
  $region5: #{editor_forward.3} parent=0 // pred_fallthru
    _
  // Predicated region
  $region6: #{editor_forward.3} parent=0 // pred_check
    _
  $region7: #{editor_forward.3} parent=0 // pred_check_branch
    %18 = sbr.rel (0) target = $region9
  $region8: #{editor_forward.3} parent=0 // pred_region
    _
  $region9: #{editor_forward.3} parent=0 // pred_fallthru
    _
  // Predicated region
  $region10: #{editor_forward.3} parent=0 // pred_check
    _
  $region11: #{editor_forward.3} parent=0 // pred_check_branch
    %20 = sbr.rel (0) target = $region13
  $region12: #{editor_forward.3} parent=0 // pred_region
    _
  $region13: #{editor_forward.3} parent=0 // pred_fallthru
    _
  // Predicated region
  $region14: #{editor_forward.3} parent=0 // pred_check
    _
  $region15: #{editor_forward.3} parent=0 // pred_check_branch
    %22 = sbr.rel (0) target = $region17
  $region16: #{editor_forward.3} parent=0 // pred_region
    _
  $region17: #{editor_forward.3} parent=0 // pred_fallthru
    _
  // Predicated region
  $region18: #{editor_forward.3} parent=0 // pred_check
    _
  $region19: #{editor_forward.3} parent=0 // pred_check_branch
    %24 = sbr.rel (0) target = $region21
  $region20: #{editor_forward.3} parent=0 // pred_region
    _
  $region21: #{editor_forward.3} parent=0 // pred_fallthru
    _
  // Predicated region
  $region22: #{editor_forward.3} parent=0 // pred_check
    _
  $region23: #{editor_forward.3} parent=0 // pred_check_branch
    %26 = sbr.rel (0) target = $region25
  $region24: #{editor_forward.3} parent=0 // pred_region
    _
  $region25: #{editor_forward.3} parent=0 // pred_fallthru
    _
  %p28 = scmp.eq.s32.totalorder 0, 0
  // Predicated region
  $region26: #{editor_forward.3} parent=0 // pred_check
    %p29 = pneg %p28
  $region27: #{editor_forward.3} parent=0 // pred_check_branch
    %31 = sbr.rel (%p29) target = $region29
  $region28: #{editor_forward.3} parent=0 // pred_region
    %vm32 = vcmask 7168
    %33 = vst.msk [vmem:[#allocation2] sm:$0xff] %vm32, -1e+30
    %34 = vst.msk [vmem:[#allocation2 + $0x8] sm:$0xff] %vm32, -1e+30
    %35 = vst.msk [vmem:[#allocation3] sm:$0xff] %vm32, 0.0
    %36 = vst.msk [vmem:[#allocation3 + $0x8] sm:$0xff] %vm32, 0.0
    %37 = vst.msk [vmem:[#allocation4] sm:$0xff] %vm32, 0.0
    %38 = vst.msk [vmem:[#allocation4 + $0x8] sm:$0xff] %vm32, 0.0
  $region29: #{editor_forward.3} parent=0 // pred_fallthru
    _
  %v39 = vld [vmem:[%s0] sm:$0xf]
  %v40 = vld [vmem:[%s0 + $0x4] sm:$0xf]
  %v41 = vld [vmem:[%s2] sm:$0xf]
  %v42 = vld [vmem:[%s2 + $0x4] sm:$0xf]
  %v43 = vld [vmem:[%s2 + $0x8] sm:$0xf]
  %v44 = vld [vmem:[%s2 + $0xc] sm:$0xf]
  %v45 = vld [vmem:[%s3] sm:$0x1]
  %v47 = vperm.slane %v45, 0
  %v51 = vunpack.c.l.b16 %v39
  %v52 = vunpack.c.l.b16 %v40
  %v53 = vpack.c.b16 %v52, %v51
  %v58 = vunpack.c.l.b16 %v41
  %v59 = vunpack.c.l.b16 %v42
  %v60 = vunpack.c.l.b16 %v43
  %v61 = vunpack.c.l.b16 %v44
  %v62 = vpack.c.b16 %v59, %v58
  %v63 = vpack.c.b16 %v61, %v60
  %vm66 = vcmask 261120
  %v68 = vsel %vm66, %v53, 0
  %70 = vmatpush.bf16.msra.mxu0 0
  %71 = vmatpush.bf16.msra.mxu0 0
  %72 = vmatpush.bf16.msra.mxu0 0
  %73 = vmatpush.bf16.msra.mxu0 0
  %74 = vmatpush.bf16.msra.mxu0 0
  %75 = vmatpush.bf16.msra.mxu0 0
  %76 = vmatpush.bf16.msra.mxu0 %v63
  %77 = vmatpush.bf16.msra.mxu0 %v62
  %78 = vmatmul.bf16.gmra.mxu0 %v68
  %v79 = vpop.f32.mrf.mxu0
  %v80 = vadd.f32 %v47, %v79
  %v81 = vpop.f32.mrf.mxu0
  %v82 = vadd.f32 %v47, %v81
  %83 = vdwg.mxu0
  %v84 = vpack.c.bf16 %v80, %v80
  %v85 = vpack.c.bf16 %v82, %v82
  %86 = vst [vmem:[%s6] sm:$0xf] %v84
  %87 = vst [vmem:[%s6 + $0x4] sm:$0xf] %v85
  %v88 = vlaneseq
  %v89 = vand.u32 %v88, 127
  %s90 = smul.u32 0, 128
  %v91 = vstv %s90
  %v92 = vadd.s32 %v89, %v91
  %vm93 = vcmp.lt.s32.totalorder %v92, 128
  %v94 = vsel %vm93, %v80, -1e+30
  %v95 = vsel %vm93, %v82, -1e+30
  %v96 = vld [vmem:[#allocation2] sm:$0xff]
  %v97 = vld [vmem:[#allocation2 + $0x8] sm:$0xff]
  %98 = vmax.xlane.f32.xlu0 %v94
  %v99 = vpop.xlane.xlu0 %98
  %100 = vmax.xlane.f32.xlu0 %v95
  %v101 = vpop.xlane.xlu0 %100
  %v102 = vmax.f32 %v96, %v99
  %v103 = vmax.f32 %v97, %v101
  %v104 = vld [vmem:[#allocation3] sm:$0xff]
  %v105 = vld [vmem:[#allocation3 + $0x8] sm:$0xff]
  %v106 = vsub.f32 %v96, %v102
  %v107 = vsub.f32 %v97, %v103
  %v108 = vmul.f32 %v106, 1.442695
  %v109 = vpow.pop %v108
  %v110 = vmul.f32 %v107, 1.442695
  %v111 = vpow.pop %v110
  %v112 = vmul.f32 %v104, %v109
  %v113 = vmul.f32 %v105, %v111
  %115 = vset.pattern.permute.xlu0 0
  %116 = vperm.xlu0 %115, %v102
  %v117 = vpop.permute.xlu0 %116
  %120 = vset.pattern.permute.xlu0 0
  %121 = vperm.xlu0 %120, %v103
  %v122 = vpop.permute.xlu0 %121
  %v124 = vsub.f32 %v94, %v117
  %v125 = vsub.f32 %v95, %v122
  %v126 = vmul.f32 %v124, 1.442695
  %v127 = vpow.pop %v126
  %v128 = vmul.f32 %v125, 1.442695
  %v129 = vpow.pop %v128
  %130 = vadd.xlane.f32.xlu0 %v127
  %v131 = vpop.xlane.xlu0 %130
  %132 = vadd.xlane.f32.xlu0 %v129
  %v133 = vpop.xlane.xlu0 %132
  %v134 = vadd.f32 %v112, %v131
  %v135 = vadd.f32 %v113, %v133
  %vm136 = vcmask 7168
  %137 = vst.msk [vmem:[#allocation3] sm:$0xff] %vm136, %v134
  %138 = vst.msk [vmem:[#allocation3 + $0x8] sm:$0xff] %vm136, %v135
  %139 = vst.msk [vmem:[#allocation2] sm:$0xff] %vm136, %v102
  %140 = vst.msk [vmem:[#allocation2 + $0x8] sm:$0xff] %vm136, %v103
  %v141 = vld [vmem:[%s4] sm:$0xff]
  %v142 = vld [vmem:[%s4 + $0x8] sm:$0xff]
  %v143 = vld [vmem:[#allocation4] sm:$0xff]
  %v144 = vld [vmem:[#allocation4 + $0x8] sm:$0xff]
  %145 = vset.pattern.permute.xlu0 0
  %146 = vperm.xlu0 %145, %v141
  %v147 = vpop.permute.xlu0 %146
  %148 = vset.pattern.permute.xlu0 0
  %149 = vperm.xlu0 %148, %v142
  %v150 = vpop.permute.xlu0 %149
  %vm151 = vcmp.eq.s32.totalorder %v92, %v147
  %vm152 = vcmp.eq.s32.totalorder %v92, %v150
  %v153 = vsel %vm151, %v80, 0.0
  %v154 = vsel %vm152, %v82, 0.0
  %155 = vadd.xlane.f32.xlu0 %v153
  %v156 = vpop.xlane.xlu0 %155
  %157 = vadd.xlane.f32.xlu0 %v154
  %v158 = vpop.xlane.xlu0 %157
  %v159 = vadd.f32 %v143, %v156
  %v160 = vadd.f32 %v144, %v158
  %161 = vst.msk [vmem:[#allocation4] sm:$0xff] %vm136, %v159
  %162 = vst.msk [vmem:[#allocation4 + $0x8] sm:$0xff] %vm136, %v160
  // Predicated region
  $region30: #{editor_forward.3} parent=0 // pred_check
    %p163 = pneg %p28
  $region31: #{editor_forward.3} parent=0 // pred_check_branch
    %165 = sbr.rel (%p163) target = $region33
  $region32: #{editor_forward.3} parent=0 // pred_region
    %v166 = vld [vmem:[#allocation2] sm:$0xff]
    %v167 = vld [vmem:[#allocation2 + $0x8] sm:$0xff]
    %v168 = vld [vmem:[#allocation3] sm:$0xff]
    %v169 = vld [vmem:[#allocation3 + $0x8] sm:$0xff]
    %v170 = vlog2.pop %v168
    %v171 = vmul.f32 %v170, 0.6931472
    %v172 = vlog2.pop %v169
    %v173 = vmul.f32 %v172, 0.6931472
    %v174 = vadd.f32 %v166, %v171
    %v175 = vadd.f32 %v167, %v173
    %v176 = vld [vmem:[%s0] sm:$0xf]
    %v177 = vld [vmem:[%s0 + $0x4] sm:$0xf]
    %v178 = vld [vmem:[%s1] sm:$0xf]
    %v179 = vld [vmem:[%s1 + $0x4] sm:$0xf]
    %v180 = vld [vmem:[%s1 + $0x8] sm:$0xf]
    %v181 = vld [vmem:[%s1 + $0xc] sm:$0xf]
    %v182 = vld [vmem:[#allocation5] sm:$0x1]
    %v184 = vperm.slane %v182, 0
    %v188 = vunpack.c.l.b16 %v176
    %v189 = vunpack.c.l.b16 %v177
    %v190 = vpack.c.b16 %v189, %v188
    %v195 = vunpack.c.l.b16 %v178
    %v196 = vunpack.c.l.b16 %v179
    %v197 = vunpack.c.l.b16 %v180
    %v198 = vunpack.c.l.b16 %v181
    %v199 = vpack.c.b16 %v196, %v195
    %v200 = vpack.c.b16 %v198, %v197
    %v204 = vsel %vm66, %v190, 0
    %206 = vmatpush.bf16.msra.mxu0 0
    %207 = vmatpush.bf16.msra.mxu0 0
    %208 = vmatpush.bf16.msra.mxu0 0
    %209 = vmatpush.bf16.msra.mxu0 0
    %210 = vmatpush.bf16.msra.mxu0 0
    %211 = vmatpush.bf16.msra.mxu0 0
    %212 = vmatpush.bf16.msra.mxu0 %v200
    %213 = vmatpush.bf16.msra.mxu0 %v199
    %214 = vmatmul.bf16.gmra.mxu0 %v204
    %v215 = vpop.f32.mrf.mxu0
    %v216 = vadd.f32 %v184, %v215
    %v217 = vpop.f32.mrf.mxu0
    %v218 = vadd.f32 %v184, %v217
    %219 = vdwg.mxu0
    %vm220 = vcmp.ne.s32.totalorder %v141, 0
    %vm221 = vcmp.ne.s32.totalorder %v142, 0
    %v222 = vsel %vm220, 1, 0
    %v223 = vsel %vm221, 1, 0
    %v224 = vcvt.s32.f32 %v222
    %v225 = vcvt.s32.f32 %v223
    %v226 = vld [vmem:[#allocation4] sm:$0xff]
    %v227 = vld [vmem:[#allocation4 + $0x8] sm:$0xff]
    %v228 = vsub.f32 %v174, %v226
    %v229 = vsub.f32 %v175, %v227
    %v230 = vmul.f32 %v228, %v224
    %v231 = vmul.f32 %v229, %v225
    %v232 = vmul.f32 %v174, 128.0
    %v233 = vmul.f32 %v175, 128.0
    %v234 = vsub.f32 %v232, %v216
    %v235 = vsub.f32 %v233, %v218
    %v236 = vmul.f32 %v234, %v224
    %v237 = vmul.f32 %v235, %v225
    %240 = vrot.lane.b32.xlu0 %v236, 1
    %v241 = vpop.permute.xlu0 %240
    %242 = vrot.lane.b32.xlu0 %v237, 1
    %v243 = vpop.permute.xlu0 %242
    %v246 = vsel %vm136, %v230, %v241
    %v247 = vsel %vm136, %v231, %v243
    %vm248 = vcmask 15360
    %249 = vst.msk [vmem:[%s7] sm:$0xff] %vm248, %v246
    %250 = vst.msk [vmem:[%s7 + $0x8] sm:$0xff] %vm248, %v247
  $region33: #{editor_forward.3} parent=0 // pred_fallthru
    _
  // Predicated region
  $region34: #{editor_forward.3} parent=0 // pred_check
    _
  $region35: #{editor_forward.3} parent=0 // pred_check_branch
    %252 = sbr.rel (0) target = $region37
  $region36: #{editor_forward.3} parent=0 // pred_region
    _
  $region37: #{editor_forward.3} parent=0 // pred_fallthru
    _
  // Predicated region
  $region38: #{editor_forward.3} parent=0 // pred_check
    _
  $region39: #{editor_forward.3} parent=0 // pred_check_branch
    %254 = sbr.rel (0) target = $region41
  $region40: #{editor_forward.3} parent=0 // pred_region
    _
  $region41: #{editor_forward.3} parent=0 // pred_fallthru
    _
  // Predicated region
  $region42: #{editor_forward.3} parent=0 // pred_check
    _
  $region43: #{editor_forward.3} parent=0 // pred_check_branch
    %256 = sbr.rel (0) target = $region45
  $region44: #{editor_forward.3} parent=0 // pred_region
    _
  $region45: #{editor_forward.3} parent=0 // pred_fallthru
    _
  // Predicated region
  $region46: #{editor_forward.3} parent=0 // pred_check
    _
  $region47: #{editor_forward.3} parent=0 // pred_check_branch
    %258 = sbr.rel (0) target = $region49
  $region48: #{editor_forward.3} parent=0 // pred_region
    _
  $region49: #{editor_forward.3} parent=0 // pred_fallthru
    _

</llo_original>
